<compile_context>
chip_gen: v6e
topology: v6e:2x2x1
jax: 0.10.0
libtpu: 0.0.40
codegen_flags: <defaults>
</compile_context>

<pallas_src>
import functools

import jax
import jax.numpy as jnp
from jax.experimental import pallas as pl
from jax.experimental.pallas import tpu as pltpu

# Layer sizes from the PyTorch module.
DIMS = [3, 60, 120, 60, 30, 1]


def _mlp_kernel(x_ref,
                w1_ref, b1_ref,
                w2_ref, b2_ref,
                w3_ref, b3_ref,
                w4_ref, b4_ref,
                w5t_ref, b5_ref,
                o_ref, *, use_bf16):
    # Batch-on-lanes: x is (3, TB); every activation is (features, TB), so the
    # batch tile occupies the full 128-lane axis on every layer and the output
    # store is a lane-dense (1, TB) row.
    x = x_ref[...]                                               # (3, TB) f32
    w1 = w1_ref[...]                                             # (60, 3)

    # Layer 1: Linear(3, 60) + Tanh  -> (60, TB)
    # K=3 would be >98% MXU-tile padding, so do it as 3 VPU broadcast
    # multiply-adds (VALU slots are idle while the MXU streams layers 2-4);
    # tanh goes to the EUP (separate bundle slot).
    h = (w1[:, 0:1] * x[0:1, :]
         + w1[:, 1:2] * x[1:2, :]
         + w1[:, 2:3] * x[2:3, :]) + b1_ref[...]
    h = jnp.tanh(h)

    # Layers 2-4: the only layers worth the MXU. Optional bf16 operands
    # (MXU-native rate), always f32 accumulation.
    def dense_relu(w_ref, b_ref, a):
        w = w_ref[...]
        if use_bf16:
            w = w.astype(jnp.bfloat16)
            a = a.astype(jnp.bfloat16)
        z = jnp.dot(w, a, preferred_element_type=jnp.float32) + b_ref[...]
        return jnp.maximum(z, 0.0)

    h = dense_relu(w2_ref, b2_ref, h)    # Linear(60, 120) + ReLU -> (120, TB)
    h = dense_relu(w3_ref, b3_ref, h)    # Linear(120, 60) + ReLU -> (60, TB)
    h = dense_relu(w4_ref, b4_ref, h)    # Linear(60, 30)  + ReLU -> (30, TB)

    # Layer 5: Linear(30, 1), no activation -> (1, TB).
    # An M=1 output wastes >=99% of an MXU tile; instead VPU-multiply by the
    # (30, 1) weight column and reduce over the 30 logical sublanes (XLU).
    out = jnp.sum(h * w5t_ref[...], axis=0, keepdims=True) + b5_ref[...]
    o_ref[...] = out.astype(o_ref.dtype)


@functools.partial(jax.jit, static_argnames=("block_n", "use_bf16"))
def mlp_forward(x, params, *, block_n=8192, use_bf16=False):
    """x: (N, 3) float32. params: list of (W: (out, in), b: (out, 1))."""
    n, d_in = x.shape
    assert d_in == DIMS[0]

    # Lane-aligned batch tile: no bigger than the lane-rounded batch, and small
    # enough that the grid has >= 2 steps whenever N allows (keeps both v7x
    # TensorCores busy; negligible cost on single-TC v5e/v6e).
    n_lanes = pl.cdiv(n, 128) * 128
    half = pl.cdiv(pl.cdiv(n, 2), 128) * 128
    bn = max(128, min(block_n, half, n_lanes))
    grid = (pl.cdiv(n, bn),)

    # Batch on the lane axis (layout plumbing only).
    # TODO(synk): once MXU work is fully relieved, fuse this transpose into the
    # upstream producer (emit x directly as (3, N)) to drop ~24 B/point of
    # extra HBM traffic from the separate XLA transpose pass.
    xt = x.T  # (3, N)

    # x / out: tiled over batch (lanes); weights & biases: full-array blocks
    # with constant index_map (loaded once, VMEM-resident across grid steps).
    in_specs = [pl.BlockSpec((DIMS[0], bn), lambda i: (0, i))]
    flat_params = []
    n_layers = len(params)
    for li, (w, b) in enumerate(params):
        if li == n_layers - 1:
            w = w.T  # (30, 1) column layout for the VPU + sublane-reduce layer
        # NOTE: these are grid-invariant; pipeline_mode=pl.Buffered(1) would
        # shave ~130 KiB of pointless double-buffering, skipped for
        # portability across jax versions.
        in_specs.append(pl.BlockSpec(w.shape, lambda i: (0, 0)))
        in_specs.append(pl.BlockSpec(b.shape, lambda i: (0, 0)))
        flat_params.extend([w, b])

    out = pl.pallas_call(
        functools.partial(_mlp_kernel, use_bf16=use_bf16),
        out_shape=jax.ShapeDtypeStruct((DIMS[-1], n), jnp.float32),
        grid_spec=pltpu.PrefetchScalarGridSpec(
            num_scalar_prefetch=0,
            grid=grid,
            in_specs=in_specs,
            out_specs=pl.BlockSpec((DIMS[-1], bn), lambda i: (0, i)),
        ),
        compiler_params=pltpu.CompilerParams(
            dimension_semantics=("parallel",),
            vmem_limit_bytes=32 * 1024 * 1024),
    )(xt, *flat_params)

    # (1, N) -> (N, 1); row-major reshape preserves order.
    return out.reshape(n, DIMS[-1])


def init_params(key):
    """Deterministic init matching PyTorch nn.Linear defaults.

    Weights in PyTorch's native (out, in) layout, biases as (out, 1),
    U(-1/sqrt(fan_in), 1/sqrt(fan_in)).
    """
    params = []
    for i in range(len(DIMS) - 1):
        fan_in, fan_out = DIMS[i], DIMS[i + 1]
        key, kw, kb = jax.random.split(key, 3)
        bound = 1.0 / (fan_in ** 0.5)
        w = jax.random.uniform(kw, (fan_out, fan_in), jnp.float32, -bound, bound)
        b = jax.random.uniform(kb, (fan_out, 1), jnp.float32, -bound, bound)
        params.append((w, b))
    return params


def mlp_reference(x, params):
    """Pure-JAX reference (standard (N, feat) layout) for correctness check."""
    h = jnp.tanh(x @ params[0][0].T + params[0][1].T)
    h = jnp.maximum(h @ params[1][0].T + params[1][1].T, 0.0)
    h = jnp.maximum(h @ params[2][0].T + params[2][1].T, 0.0)
    h = jnp.maximum(h @ params[3][0].T + params[3][1].T, 0.0)
    return h @ params[4][0].T + params[4][1].T


if __name__ == "__main__":
    key = jax.random.PRNGKey(0)
    kx, kp = jax.random.split(key)
    params = init_params(kp)

    # Small batches of 3D points (N, 3), like sampling an implicit surface.
    # N=256 -> 2 full tiles; N=1000 -> partial edge block / masked writeback.
    for n in (256, 1000):
        x = jax.random.normal(jax.random.fold_in(kx, n), (n, DIMS[0]),
                              jnp.float32)
        out = jax.block_until_ready(mlp_forward(x, params))
        ref = mlp_reference(x, params)
        assert out.shape == (n, 1), out.shape
        assert jnp.allclose(out, ref, atol=1e-4, rtol=1e-4), (
            float(jnp.max(jnp.abs(out - ref))))

    print("KERNEL_OK")
</pallas_src>

<mosaic_0001>
module attributes {stable_mosaic.version = 11 : i64} {
  func.func @_mlp_kernel(%arg0: i32, %arg1: memref<3x128xf32, #tpu.memory_space<vmem>>, %arg2: memref<60x3xf32, #tpu.memory_space<vmem>>, %arg3: memref<60x1xf32, #tpu.memory_space<vmem>>, %arg4: memref<120x60xf32, #tpu.memory_space<vmem>>, %arg5: memref<120x1xf32, #tpu.memory_space<vmem>>, %arg6: memref<60x120xf32, #tpu.memory_space<vmem>>, %arg7: memref<60x1xf32, #tpu.memory_space<vmem>>, %arg8: memref<30x60xf32, #tpu.memory_space<vmem>>, %arg9: memref<30x1xf32, #tpu.memory_space<vmem>>, %arg10: memref<30x1xf32, #tpu.memory_space<vmem>>, %arg11: memref<1x1xf32, #tpu.memory_space<vmem>>, %arg12: memref<1x128xf32, #tpu.memory_space<vmem>>) attributes {dimension_semantics = [#tpu.dimension_semantics<parallel>], iteration_bounds = array<i64: 2>, scalar_prefetch = 0 : i64, scratch_operands = 0 : i64, tpu.core_type = #tpu.core_type<tc>, window_params = [{transform_indices = @transform_0, window_bounds = array<i64: 3, 128>}, {pipeline_mode = #tpu.pipeline_mode<synchronous>, transform_indices = @transform_1, window_bounds = array<i64: 60, 3>}, {pipeline_mode = #tpu.pipeline_mode<synchronous>, transform_indices = @transform_2, window_bounds = array<i64: 60, 1>}, {pipeline_mode = #tpu.pipeline_mode<synchronous>, transform_indices = @transform_3, window_bounds = array<i64: 120, 60>}, {pipeline_mode = #tpu.pipeline_mode<synchronous>, transform_indices = @transform_4, window_bounds = array<i64: 120, 1>}, {pipeline_mode = #tpu.pipeline_mode<synchronous>, transform_indices = @transform_5, window_bounds = array<i64: 60, 120>}, {pipeline_mode = #tpu.pipeline_mode<synchronous>, transform_indices = @transform_6, window_bounds = array<i64: 60, 1>}, {pipeline_mode = #tpu.pipeline_mode<synchronous>, transform_indices = @transform_7, window_bounds = array<i64: 30, 60>}, {pipeline_mode = #tpu.pipeline_mode<synchronous>, transform_indices = @transform_8, window_bounds = array<i64: 30, 1>}, {pipeline_mode = #tpu.pipeline_mode<synchronous>, transform_indices = @transform_9, window_bounds = array<i64: 30, 1>}, {pipeline_mode = #tpu.pipeline_mode<synchronous>, transform_indices = @transform_10, window_bounds = array<i64: 1, 1>}, {transform_indices = @transform_11, window_bounds = array<i64: 1, 128>}]} {
    %c0 = arith.constant 0 : index
    %c0_0 = arith.constant 0 : index
    %0 = vector.load %arg1[%c0, %c0_0] : memref<3x128xf32, #tpu.memory_space<vmem>>, vector<3x128xf32>
    %c0_1 = arith.constant 0 : index
    %c0_2 = arith.constant 0 : index
    %1 = vector.load %arg2[%c0_1, %c0_2] : memref<60x3xf32, #tpu.memory_space<vmem>>, vector<60x3xf32>
    %2 = vector.extract_strided_slice %1 {offsets = [0, 0], sizes = [60, 1], strides = [1, 1]} : vector<60x3xf32> to vector<60x1xf32>
    %3 = vector.extract_strided_slice %0 {offsets = [0, 0], sizes = [1, 128], strides = [1, 1]} : vector<3x128xf32> to vector<1x128xf32>
    %4 = vector.broadcast %2 : vector<60x1xf32> to vector<60x128xf32>
    %5 = vector.broadcast %3 : vector<1x128xf32> to vector<60x128xf32>
    %6 = arith.mulf %4, %5 : vector<60x128xf32>
    %7 = vector.extract_strided_slice %1 {offsets = [0, 1], sizes = [60, 1], strides = [1, 1]} : vector<60x3xf32> to vector<60x1xf32>
    %8 = vector.extract_strided_slice %0 {offsets = [1, 0], sizes = [1, 128], strides = [1, 1]} : vector<3x128xf32> to vector<1x128xf32>
    %9 = vector.broadcast %7 : vector<60x1xf32> to vector<60x128xf32>
    %10 = vector.broadcast %8 : vector<1x128xf32> to vector<60x128xf32>
    %11 = arith.mulf %9, %10 : vector<60x128xf32>
    %12 = arith.addf %6, %11 : vector<60x128xf32>
    %13 = vector.extract_strided_slice %1 {offsets = [0, 2], sizes = [60, 1], strides = [1, 1]} : vector<60x3xf32> to vector<60x1xf32>
    %14 = vector.extract_strided_slice %0 {offsets = [2, 0], sizes = [1, 128], strides = [1, 1]} : vector<3x128xf32> to vector<1x128xf32>
    %15 = vector.broadcast %13 : vector<60x1xf32> to vector<60x128xf32>
    %16 = vector.broadcast %14 : vector<1x128xf32> to vector<60x128xf32>
    %17 = arith.mulf %15, %16 : vector<60x128xf32>
    %18 = arith.addf %12, %17 : vector<60x128xf32>
    %c0_3 = arith.constant 0 : index
    %c0_4 = arith.constant 0 : index
    %19 = vector.load %arg3[%c0_3, %c0_4] : memref<60x1xf32, #tpu.memory_space<vmem>>, vector<60x1xf32>
    %20 = vector.broadcast %19 : vector<60x1xf32> to vector<60x128xf32>
    %21 = arith.addf %18, %20 : vector<60x128xf32>
    %22 = math.tanh %21 : vector<60x128xf32>
    %c0_5 = arith.constant 0 : index
    %c0_6 = arith.constant 0 : index
    %23 = vector.load %arg4[%c0_5, %c0_6] : memref<120x60xf32, #tpu.memory_space<vmem>>, vector<120x60xf32>
    %cst = arith.constant dense<0.000000e+00> : vector<120x128xf32>
    %24 = tpu.matmul %23, %22, %cst {dimension_numbers = #tpu.dot_dimension_numbers<[1], [0], [0], [1], [0, 0, 1, 1], [], []>} : vector<120x60xf32>, vector<60x128xf32>, vector<120x128xf32> -> vector<120x128xf32>
    %c0_7 = arith.constant 0 : index
    %c0_8 = arith.constant 0 : index
    %25 = vector.load %arg5[%c0_7, %c0_8] : memref<120x1xf32, #tpu.memory_space<vmem>>, vector<120x1xf32>
    %26 = vector.broadcast %25 : vector<120x1xf32> to vector<120x128xf32>
    %27 = arith.addf %24, %26 : vector<120x128xf32>
    %cst_9 = arith.constant 0.000000e+00 : f32
    %28 = vector.broadcast %cst_9 : f32 to vector<120x128xf32>
    %29 = arith.maximumf %27, %28 : vector<120x128xf32>
    %c0_10 = arith.constant 0 : index
    %c0_11 = arith.constant 0 : index
    %30 = vector.load %arg6[%c0_10, %c0_11] : memref<60x120xf32, #tpu.memory_space<vmem>>, vector<60x120xf32>
    %cst_12 = arith.constant dense<0.000000e+00> : vector<60x128xf32>
    %31 = tpu.matmul %30, %29, %cst_12 {dimension_numbers = #tpu.dot_dimension_numbers<[1], [0], [0], [1], [0, 0, 1, 1], [], []>} : vector<60x120xf32>, vector<120x128xf32>, vector<60x128xf32> -> vector<60x128xf32>
    %c0_13 = arith.constant 0 : index
    %c0_14 = arith.constant 0 : index
    %32 = vector.load %arg7[%c0_13, %c0_14] : memref<60x1xf32, #tpu.memory_space<vmem>>, vector<60x1xf32>
    %33 = vector.broadcast %32 : vector<60x1xf32> to vector<60x128xf32>
    %34 = arith.addf %31, %33 : vector<60x128xf32>
    %cst_15 = arith.constant 0.000000e+00 : f32
    %35 = vector.broadcast %cst_15 : f32 to vector<60x128xf32>
    %36 = arith.maximumf %34, %35 : vector<60x128xf32>
    %c0_16 = arith.constant 0 : index
    %c0_17 = arith.constant 0 : index
    %37 = vector.load %arg8[%c0_16, %c0_17] : memref<30x60xf32, #tpu.memory_space<vmem>>, vector<30x60xf32>
    %cst_18 = arith.constant dense<0.000000e+00> : vector<30x128xf32>
    %38 = tpu.matmul %37, %36, %cst_18 {dimension_numbers = #tpu.dot_dimension_numbers<[1], [0], [0], [1], [0, 0, 1, 1], [], []>} : vector<30x60xf32>, vector<60x128xf32>, vector<30x128xf32> -> vector<30x128xf32>
    %c0_19 = arith.constant 0 : index
    %c0_20 = arith.constant 0 : index
    %39 = vector.load %arg9[%c0_19, %c0_20] : memref<30x1xf32, #tpu.memory_space<vmem>>, vector<30x1xf32>
    %40 = vector.broadcast %39 : vector<30x1xf32> to vector<30x128xf32>
    %41 = arith.addf %38, %40 : vector<30x128xf32>
    %cst_21 = arith.constant 0.000000e+00 : f32
    %42 = vector.broadcast %cst_21 : f32 to vector<30x128xf32>
    %43 = arith.maximumf %41, %42 : vector<30x128xf32>
    %c0_22 = arith.constant 0 : index
    %c0_23 = arith.constant 0 : index
    %44 = vector.load %arg10[%c0_22, %c0_23] : memref<30x1xf32, #tpu.memory_space<vmem>>, vector<30x1xf32>
    %45 = vector.broadcast %44 : vector<30x1xf32> to vector<30x128xf32>
    %46 = arith.mulf %43, %45 : vector<30x128xf32>
    %cst_24 = arith.constant dense<0.000000e+00> : vector<128xf32>
    %47 = vector.multi_reduction <add>, %46, %cst_24 [0] : vector<30x128xf32> to vector<128xf32>
    %48 = vector.shape_cast %47 : vector<128xf32> to vector<1x128xf32>
    %c0_25 = arith.constant 0 : index
    %c0_26 = arith.constant 0 : index
    %49 = vector.load %arg11[%c0_25, %c0_26] : memref<1x1xf32, #tpu.memory_space<vmem>>, vector<1x1xf32>
    %50 = vector.broadcast %49 : vector<1x1xf32> to vector<1x128xf32>
    %51 = arith.addf %48, %50 : vector<1x128xf32>
    %c0_27 = arith.constant 0 : index
    %c0_28 = arith.constant 0 : index
    %52 = vector.load %arg12[%c0_27, %c0_28] : memref<1x128xf32, #tpu.memory_space<vmem>>, vector<1x128xf32>
    tpu.vector_store %arg12[%c0_27, %c0_28], %51 {strides = array<i32>} : memref<1x128xf32, #tpu.memory_space<vmem>>, vector<1x128xf32>,
    return
  }
  func.func @transform_0(%arg0: i32) -> (i32, i32) {
    %c0_i32 = arith.constant 0 : i32
    %c0_i32_0 = arith.constant 0 : i32
    return %c0_i32, %arg0 : i32, i32
  }
  func.func @transform_1(%arg0: i32) -> (i32, i32) {
    %c0_i32 = arith.constant 0 : i32
    %c0_i32_0 = arith.constant 0 : i32
    %c0_i32_1 = arith.constant 0 : i32
    return %c0_i32, %c0_i32_0 : i32, i32
  }
  func.func @transform_2(%arg0: i32) -> (i32, i32) {
    %c0_i32 = arith.constant 0 : i32
    %c0_i32_0 = arith.constant 0 : i32
    %c0_i32_1 = arith.constant 0 : i32
    return %c0_i32, %c0_i32_0 : i32, i32
  }
  func.func @transform_3(%arg0: i32) -> (i32, i32) {
    %c0_i32 = arith.constant 0 : i32
    %c0_i32_0 = arith.constant 0 : i32
    %c0_i32_1 = arith.constant 0 : i32
    return %c0_i32, %c0_i32_0 : i32, i32
  }
  func.func @transform_4(%arg0: i32) -> (i32, i32) {
    %c0_i32 = arith.constant 0 : i32
    %c0_i32_0 = arith.constant 0 : i32
    %c0_i32_1 = arith.constant 0 : i32
    return %c0_i32, %c0_i32_0 : i32, i32
  }
  func.func @transform_5(%arg0: i32) -> (i32, i32) {
    %c0_i32 = arith.constant 0 : i32
    %c0_i32_0 = arith.constant 0 : i32
    %c0_i32_1 = arith.constant 0 : i32
    return %c0_i32, %c0_i32_0 : i32, i32
  }
  func.func @transform_6(%arg0: i32) -> (i32, i32) {
    %c0_i32 = arith.constant 0 : i32
    %c0_i32_0 = arith.constant 0 : i32
    %c0_i32_1 = arith.constant 0 : i32
    return %c0_i32, %c0_i32_0 : i32, i32
  }
  func.func @transform_7(%arg0: i32) -> (i32, i32) {
    %c0_i32 = arith.constant 0 : i32
    %c0_i32_0 = arith.constant 0 : i32
    %c0_i32_1 = arith.constant 0 : i32
    return %c0_i32, %c0_i32_0 : i32, i32
  }
  func.func @transform_8(%arg0: i32) -> (i32, i32) {
    %c0_i32 = arith.constant 0 : i32
    %c0_i32_0 = arith.constant 0 : i32
    %c0_i32_1 = arith.constant 0 : i32
    return %c0_i32, %c0_i32_0 : i32, i32
  }
  func.func @transform_9(%arg0: i32) -> (i32, i32) {
    %c0_i32 = arith.constant 0 : i32
    %c0_i32_0 = arith.constant 0 : i32
    %c0_i32_1 = arith.constant 0 : i32
    return %c0_i32, %c0_i32_0 : i32, i32
  }
  func.func @transform_10(%arg0: i32) -> (i32, i32) {
    %c0_i32 = arith.constant 0 : i32
    %c0_i32_0 = arith.constant 0 : i32
    %c0_i32_1 = arith.constant 0 : i32
    return %c0_i32, %c0_i32_0 : i32, i32
  }
  func.func @transform_11(%arg0: i32) -> (i32, i32) {
    %c0_i32 = arith.constant 0 : i32
    %c0_i32_0 = arith.constant 0 : i32
    return %c0_i32, %arg0 : i32, i32
  }
}

</mosaic_0001>

<llo_original>
// kernel: mlp_forward.1
$region0: #{mlp_forward.1}
  #allocation0 [shape = 'u32[]', space=smem, size = 0x4, offset = 0x4, fixed_abs, tag = 'smem constant byte address 0x4 - core index']
  #allocation1 [shape = 'u32[144,128]{1,0:T(1,128)}', space=vmem, size = 0x12000, scoped, tag = 'internal scratch']
  #allocation2 [shape = 'f32[1,1]{1,0:T(1,128)S(1)}', space=vmem, size = 0x200, scoped, tag = 'scoped memory for mlp_forward.1']
  %s0 = inlined_call_operand.vmem [shape: f32[3,256], index: 0, kind: input, shape index: {}]
  %s1 = inlined_call_operand.vmem [shape: f32[60,3], index: 1, kind: input, shape index: {}]
  %s2 = inlined_call_operand.vmem [shape: f32[60,1], index: 2, kind: input, shape index: {}]
  %s3 = inlined_call_operand.vmem [shape: f32[120,60], index: 3, kind: input, shape index: {}]
  %s4 = inlined_call_operand.vmem [shape: f32[120,1], index: 4, kind: input, shape index: {}]
  %s5 = inlined_call_operand.vmem [shape: f32[60,120], index: 5, kind: input, shape index: {}]
  %s6 = inlined_call_operand.vmem [shape: f32[60,1], index: 6, kind: input, shape index: {}]
  %s7 = inlined_call_operand.vmem [shape: f32[30,60], index: 7, kind: input, shape index: {}]
  %s8 = inlined_call_operand.vmem [shape: f32[30,1], index: 8, kind: input, shape index: {}]
  %s9 = inlined_call_operand.vmem [shape: f32[30,1], index: 9, kind: input, shape index: {}]
  %s10 = inlined_call_operand.<no memory space> [shape: f32[1,1], index: 10, kind: input, shape index: {}]
  %s11 = inlined_call_operand.hbm [shape: f32[1,256], index: 11, kind: output, shape index: {}]
  %s12 = sld [smem:[#allocation0]]
  $region77: #{mlp_forward.1} parent=0
    _
  %s14 = ssub.s32 1, %s12
  %s15 = scalar_select 0, %s14, %s12
  %v16 = vstv %s10
  %17 = vst [vmem:[#allocation2] sm:$0x1] %v16
  $region1: #{mlp_forward.1} parent=0
    #allocation3 [shape = 'u8[1024]{0}', space=vmem, size = 0x400, scoped, tag = 'output window, operand 0']
    #allocation4 [shape = 's32[2]{0}', space=sflag, size = 0x8, scoped, tag = 'scoped memory for mlp_forward.1']
    %18 = vsyncpa [#allocation4], 0
    %s19 = scalar_lea.sflag [#allocation4], 1
    %20 = vsyncpa %s19, 0
    loop: start=0, step=1, limit=4
    $region2: #{mlp_forward.1} parent=1 // loop_pre_header
      _
    $region3: #{mlp_forward.1} parent=1 // loop_header
      %s22 = sphi 0, %s26
      %p23 = scmp.ge.s32.totalorder %s22, 4
      %s32 = sphi 0, %s34
      %s35 = sphi 0, %s32
      %s36 = sphi 0, %s35
      %s52 = sphi 0, %s36
      %s56 = sphi 0, %s56
      %s58 = sphi 0, %s56
      %s59 = sphi 0, %s58
      %s73 = sphi 0, %s59
      %s77 = sphi 0, %s77
      %s79 = sphi 0, %s77
      %s80 = sphi 0, %s79
      %s94 = sphi 0, %s80
      %s98 = sphi 0, %s98
      %s100 = sphi 0, %s98
      %s101 = sphi 0, %s100
      %s115 = sphi 0, %s101
      %s119 = sphi 0, %s119
      %s121 = sphi 0, %s119
      %s122 = sphi 0, %s121
      %s136 = sphi 0, %s122
      %s140 = sphi 0, %s140
      %s142 = sphi 0, %s140
      %s143 = sphi 0, %s142
      %s157 = sphi 0, %s143
      %s161 = sphi 0, %s161
      %s163 = sphi 0, %s161
      %s164 = sphi 0, %s163
      %s178 = sphi 0, %s164
      %s182 = sphi 0, %s182
      %s184 = sphi 0, %s182
      %s185 = sphi 0, %s184
      %s199 = sphi 0, %s185
      %s203 = sphi 0, %s203
      %s205 = sphi 0, %s203
      %s206 = sphi 0, %s205
      %s220 = sphi 0, %s206
      %s224 = sphi 0, %s224
      %s226 = sphi 0, %s224
      %s227 = sphi 0, %s226
      %s241 = sphi 0, %s227
      %s245 = sphi 0, %s245
      %s247 = sphi 0, %s245
      %s248 = sphi 0, %s247
      %s262 = sphi 0, %s248
      %s268 = sphi 0, %s270
      %s271 = sphi 0, %s268
      %s272 = sphi 0, %s271
      %s288 = sphi 0, %s272
    $region4: #{mlp_forward.1} parent=1 // loop_header_branch
      %25 = sbr.rel (%p23) target = $region8
    $region5: #{mlp_forward.1} parent=1 // loop_body
      %s27 = ssub.s32 %s22, 1
      %s28 = ssub.s32 %s22, 2
      %s29 = sadd.s32 %s22, 1
      %s30 = ssub.s32 %s22, %s29
      %p31 = scmp.eq.s32.totalorder %s30, 0
      %s33 = sadd.s32 %s32, 1
      %s34 = scalar_select %p31, %s32, %s33
      %p37 = pneg %p31
      %p38 = scmp.eq.s32.totalorder %s22, 1
      %p39 = por %p37, %p38
      %p40 = scmp.ne.s32.totalorder %s32, %s35
      %p41 = scmp.eq.s32.totalorder %s22, 0
      %p42 = por %p40, %p41
      %p43 = scmp.ne.s32.totalorder %s32, %s35
      %p44 = scmp.eq.s32.totalorder %s27, 1
      %p45 = por %p43, %p44
      %p46 = scmp.ne.s32.totalorder %s35, %s36
      %p47 = scmp.eq.s32.totalorder %s27, 0
      %p48 = por %p46, %p47
      %p49 = scmp.ne.s32.totalorder %s35, %s36
      %p50 = scmp.eq.s32.totalorder %s28, 1
      %p51 = por %p49, %p50
      %p53 = scmp.ne.s32.totalorder %s36, %s52
      %p54 = scmp.eq.s32.totalorder %s28, 0
      %p55 = por %p53, %p54
      %s57 = sadd.s32 %s56, 1
      %p60 = scmp.eq.s32.totalorder %s22, 1
      %p61 = scmp.ne.s32.totalorder %s56, %s58
      %p62 = scmp.eq.s32.totalorder %s22, 0
      %p63 = por %p61, %p62
      %p64 = scmp.ne.s32.totalorder %s56, %s58
      %p65 = scmp.eq.s32.totalorder %s27, 1
      %p66 = por %p64, %p65
      %p67 = scmp.ne.s32.totalorder %s58, %s59
      %p68 = scmp.eq.s32.totalorder %s27, 0
      %p69 = por %p67, %p68
      %p70 = scmp.ne.s32.totalorder %s58, %s59
      %p71 = scmp.eq.s32.totalorder %s28, 1
      %p72 = por %p70, %p71
      %p74 = scmp.ne.s32.totalorder %s59, %s73
      %p75 = scmp.eq.s32.totalorder %s28, 0
      %p76 = por %p74, %p75
      %s78 = sadd.s32 %s77, 1
      %p81 = scmp.eq.s32.totalorder %s22, 1
      %p82 = scmp.ne.s32.totalorder %s77, %s79
      %p83 = scmp.eq.s32.totalorder %s22, 0
      %p84 = por %p82, %p83
      %p85 = scmp.ne.s32.totalorder %s77, %s79
      %p86 = scmp.eq.s32.totalorder %s27, 1
      %p87 = por %p85, %p86
      %p88 = scmp.ne.s32.totalorder %s79, %s80
      %p89 = scmp.eq.s32.totalorder %s27, 0
      %p90 = por %p88, %p89
      %p91 = scmp.ne.s32.totalorder %s79, %s80
      %p92 = scmp.eq.s32.totalorder %s28, 1
      %p93 = por %p91, %p92
      %p95 = scmp.ne.s32.totalorder %s80, %s94
      %p96 = scmp.eq.s32.totalorder %s28, 0
      %p97 = por %p95, %p96
      %s99 = sadd.s32 %s98, 1
      %p102 = scmp.eq.s32.totalorder %s22, 1
      %p103 = scmp.ne.s32.totalorder %s98, %s100
      %p104 = scmp.eq.s32.totalorder %s22, 0
      %p105 = por %p103, %p104
      %p106 = scmp.ne.s32.totalorder %s98, %s100
      %p107 = scmp.eq.s32.totalorder %s27, 1
      %p108 = por %p106, %p107
      %p109 = scmp.ne.s32.totalorder %s100, %s101
      %p110 = scmp.eq.s32.totalorder %s27, 0
      %p111 = por %p109, %p110
      %p112 = scmp.ne.s32.totalorder %s100, %s101
      %p113 = scmp.eq.s32.totalorder %s28, 1
      %p114 = por %p112, %p113
      %p116 = scmp.ne.s32.totalorder %s101, %s115
      %p117 = scmp.eq.s32.totalorder %s28, 0
      %p118 = por %p116, %p117
      %s120 = sadd.s32 %s119, 1
      %p123 = scmp.eq.s32.totalorder %s22, 1
      %p124 = scmp.ne.s32.totalorder %s119, %s121
      %p125 = scmp.eq.s32.totalorder %s22, 0
      %p126 = por %p124, %p125
      %p127 = scmp.ne.s32.totalorder %s119, %s121
      %p128 = scmp.eq.s32.totalorder %s27, 1
      %p129 = por %p127, %p128
      %p130 = scmp.ne.s32.totalorder %s121, %s122
      %p131 = scmp.eq.s32.totalorder %s27, 0
      %p132 = por %p130, %p131
      %p133 = scmp.ne.s32.totalorder %s121, %s122
      %p134 = scmp.eq.s32.totalorder %s28, 1
      %p135 = por %p133, %p134
      %p137 = scmp.ne.s32.totalorder %s122, %s136
      %p138 = scmp.eq.s32.totalorder %s28, 0
      %p139 = por %p137, %p138
      %s141 = sadd.s32 %s140, 1
      %p144 = scmp.eq.s32.totalorder %s22, 1
      %p145 = scmp.ne.s32.totalorder %s140, %s142
      %p146 = scmp.eq.s32.totalorder %s22, 0
      %p147 = por %p145, %p146
      %p148 = scmp.ne.s32.totalorder %s140, %s142
      %p149 = scmp.eq.s32.totalorder %s27, 1
      %p150 = por %p148, %p149
      %p151 = scmp.ne.s32.totalorder %s142, %s143
      %p152 = scmp.eq.s32.totalorder %s27, 0
      %p153 = por %p151, %p152
      %p154 = scmp.ne.s32.totalorder %s142, %s143
      %p155 = scmp.eq.s32.totalorder %s28, 1
      %p156 = por %p154, %p155
      %p158 = scmp.ne.s32.totalorder %s143, %s157
      %p159 = scmp.eq.s32.totalorder %s28, 0
      %p160 = por %p158, %p159
      %s162 = sadd.s32 %s161, 1
      %p165 = scmp.eq.s32.totalorder %s22, 1
      %p166 = scmp.ne.s32.totalorder %s161, %s163
      %p167 = scmp.eq.s32.totalorder %s22, 0
      %p168 = por %p166, %p167
      %p169 = scmp.ne.s32.totalorder %s161, %s163
      %p170 = scmp.eq.s32.totalorder %s27, 1
      %p171 = por %p169, %p170
      %p172 = scmp.ne.s32.totalorder %s163, %s164
      %p173 = scmp.eq.s32.totalorder %s27, 0
      %p174 = por %p172, %p173
      %p175 = scmp.ne.s32.totalorder %s163, %s164
      %p176 = scmp.eq.s32.totalorder %s28, 1
      %p177 = por %p175, %p176
      %p179 = scmp.ne.s32.totalorder %s164, %s178
      %p180 = scmp.eq.s32.totalorder %s28, 0
      %p181 = por %p179, %p180
      %s183 = sadd.s32 %s182, 1
      %p186 = scmp.eq.s32.totalorder %s22, 1
      %p187 = scmp.ne.s32.totalorder %s182, %s184
      %p188 = scmp.eq.s32.totalorder %s22, 0
      %p189 = por %p187, %p188
      %p190 = scmp.ne.s32.totalorder %s182, %s184
      %p191 = scmp.eq.s32.totalorder %s27, 1
      %p192 = por %p190, %p191
      %p193 = scmp.ne.s32.totalorder %s184, %s185
      %p194 = scmp.eq.s32.totalorder %s27, 0
      %p195 = por %p193, %p194
      %p196 = scmp.ne.s32.totalorder %s184, %s185
      %p197 = scmp.eq.s32.totalorder %s28, 1
      %p198 = por %p196, %p197
      %p200 = scmp.ne.s32.totalorder %s185, %s199
      %p201 = scmp.eq.s32.totalorder %s28, 0
      %p202 = por %p200, %p201
      %s204 = sadd.s32 %s203, 1
      %p207 = scmp.eq.s32.totalorder %s22, 1
      %p208 = scmp.ne.s32.totalorder %s203, %s205
      %p209 = scmp.eq.s32.totalorder %s22, 0
      %p210 = por %p208, %p209
      %p211 = scmp.ne.s32.totalorder %s203, %s205
      %p212 = scmp.eq.s32.totalorder %s27, 1
      %p213 = por %p211, %p212
      %p214 = scmp.ne.s32.totalorder %s205, %s206
      %p215 = scmp.eq.s32.totalorder %s27, 0
      %p216 = por %p214, %p215
      %p217 = scmp.ne.s32.totalorder %s205, %s206
      %p218 = scmp.eq.s32.totalorder %s28, 1
      %p219 = por %p217, %p218
      %p221 = scmp.ne.s32.totalorder %s206, %s220
      %p222 = scmp.eq.s32.totalorder %s28, 0
      %p223 = por %p221, %p222
      %s225 = sadd.s32 %s224, 1
      %p228 = scmp.eq.s32.totalorder %s22, 1
      %p229 = scmp.ne.s32.totalorder %s224, %s226
      %p230 = scmp.eq.s32.totalorder %s22, 0
      %p231 = por %p229, %p230
      %p232 = scmp.ne.s32.totalorder %s224, %s226
      %p233 = scmp.eq.s32.totalorder %s27, 1
      %p234 = por %p232, %p233
      %p235 = scmp.ne.s32.totalorder %s226, %s227
      %p236 = scmp.eq.s32.totalorder %s27, 0
      %p237 = por %p235, %p236
      %p238 = scmp.ne.s32.totalorder %s226, %s227
      %p239 = scmp.eq.s32.totalorder %s28, 1
      %p240 = por %p238, %p239
      %p242 = scmp.ne.s32.totalorder %s227, %s241
      %p243 = scmp.eq.s32.totalorder %s28, 0
      %p244 = por %p242, %p243
      %s246 = sadd.s32 %s245, 1
      %p249 = scmp.eq.s32.totalorder %s22, 1
      %p250 = scmp.ne.s32.totalorder %s245, %s247
      %p251 = scmp.eq.s32.totalorder %s22, 0
      %p252 = por %p250, %p251
      %p253 = scmp.ne.s32.totalorder %s245, %s247
      %p254 = scmp.eq.s32.totalorder %s27, 1
      %p255 = por %p253, %p254
      %p256 = scmp.ne.s32.totalorder %s247, %s248
      %p257 = scmp.eq.s32.totalorder %s27, 0
      %p258 = por %p256, %p257
      %p259 = scmp.ne.s32.totalorder %s247, %s248
      %p260 = scmp.eq.s32.totalorder %s28, 1
      %p261 = por %p259, %p260
      %p263 = scmp.ne.s32.totalorder %s248, %s262
      %p264 = scmp.eq.s32.totalorder %s28, 0
      %p265 = por %p263, %p264
      %s266 = ssub.s32 %s22, %s29
      %p267 = scmp.eq.s32.totalorder %s266, 0
      %s269 = sadd.s32 %s268, 1
      %s270 = scalar_select %p267, %s268, %s269
      %p273 = pneg %p267
      %p274 = scmp.eq.s32.totalorder %s22, 1
      %p275 = por %p273, %p274
      %p276 = scmp.ne.s32.totalorder %s268, %s271
      %p277 = scmp.eq.s32.totalorder %s22, 0
      %p278 = por %p276, %p277
      %p279 = scmp.ne.s32.totalorder %s268, %s271
      %p280 = scmp.eq.s32.totalorder %s27, 1
      %p281 = por %p279, %p280
      %p282 = scmp.ne.s32.totalorder %s271, %s272
      %p283 = scmp.eq.s32.totalorder %s27, 0
      %p284 = por %p282, %p283
      %p285 = scmp.ne.s32.totalorder %s271, %s272
      %p286 = scmp.eq.s32.totalorder %s28, 1
      %p287 = por %p285, %p286
      %p289 = scmp.ne.s32.totalorder %s272, %s288
      %p290 = scmp.eq.s32.totalorder %s28, 0
      %p291 = por %p289, %p290
      %p292 = scmp.le.s32.totalorder 1, %s22
      %p293 = scmp.lt.s32.totalorder %s22, 3
      %p294 = pnand %p292, %p293
      %p295 = pneg %p294
      // Predicated region
      $region9: #{mlp_forward.1} parent=5 // pred_check
        _
      $region10: #{mlp_forward.1} parent=5 // pred_check_branch
        %297 = sbr.rel (%p294) target = $region12
      $region11: #{mlp_forward.1} parent=5 // pred_region
        %s298 = ssub.s32 %s22, 1
        // Predicated region
        $region13: #{mlp_forward.1} parent=11 // pred_check
          %p299 = pneg %p69
        $region14: #{mlp_forward.1} parent=11 // pred_check_branch
          %301 = sbr.rel (%p299) target = $region16
        $region15: #{mlp_forward.1} parent=11 // pred_region
          _
        $region16: #{mlp_forward.1} parent=11 // pred_fallthru
          _
        // Predicated region
        $region17: #{mlp_forward.1} parent=11 // pred_check
          %p302 = pneg %p90
        $region18: #{mlp_forward.1} parent=11 // pred_check_branch
          %304 = sbr.rel (%p302) target = $region20
        $region19: #{mlp_forward.1} parent=11 // pred_region
          _
        $region20: #{mlp_forward.1} parent=11 // pred_fallthru
          _
        // Predicated region
        $region21: #{mlp_forward.1} parent=11 // pred_check
          %p305 = pneg %p111
        $region22: #{mlp_forward.1} parent=11 // pred_check_branch
          %307 = sbr.rel (%p305) target = $region24
        $region23: #{mlp_forward.1} parent=11 // pred_region
          _
        $region24: #{mlp_forward.1} parent=11 // pred_fallthru
          _
        // Predicated region
        $region25: #{mlp_forward.1} parent=11 // pred_check
          %p308 = pneg %p132
        $region26: #{mlp_forward.1} parent=11 // pred_check_branch
          %310 = sbr.rel (%p308) target = $region28
        $region27: #{mlp_forward.1} parent=11 // pred_region
          _
        $region28: #{mlp_forward.1} parent=11 // pred_fallthru
          _
        // Predicated region
        $region29: #{mlp_forward.1} parent=11 // pred_check
          %p311 = pneg %p153
        $region30: #{mlp_forward.1} parent=11 // pred_check_branch
          %313 = sbr.rel (%p311) target = $region32
        $region31: #{mlp_forward.1} parent=11 // pred_region
          _
        $region32: #{mlp_forward.1} parent=11 // pred_fallthru
          _
        // Predicated region
        $region33: #{mlp_forward.1} parent=11 // pred_check
          %p314 = pneg %p174
        $region34: #{mlp_forward.1} parent=11 // pred_check_branch
          %316 = sbr.rel (%p314) target = $region36
        $region35: #{mlp_forward.1} parent=11 // pred_region
          _
        $region36: #{mlp_forward.1} parent=11 // pred_fallthru
          _
        // Predicated region
        $region37: #{mlp_forward.1} parent=11 // pred_check
          %p317 = pneg %p195
        $region38: #{mlp_forward.1} parent=11 // pred_check_branch
          %319 = sbr.rel (%p317) target = $region40
        $region39: #{mlp_forward.1} parent=11 // pred_region
          _
        $region40: #{mlp_forward.1} parent=11 // pred_fallthru
          _
        // Predicated region
        $region41: #{mlp_forward.1} parent=11 // pred_check
          %p320 = pneg %p216
        $region42: #{mlp_forward.1} parent=11 // pred_check_branch
          %322 = sbr.rel (%p320) target = $region44
        $region43: #{mlp_forward.1} parent=11 // pred_region
          _
        $region44: #{mlp_forward.1} parent=11 // pred_fallthru
          _
        // Predicated region
        $region45: #{mlp_forward.1} parent=11 // pred_check
          %p323 = pneg %p237
        $region46: #{mlp_forward.1} parent=11 // pred_check_branch
          %325 = sbr.rel (%p323) target = $region48
        $region47: #{mlp_forward.1} parent=11 // pred_region
          _
        $region48: #{mlp_forward.1} parent=11 // pred_fallthru
          _
        // Predicated region
        $region49: #{mlp_forward.1} parent=11 // pred_check
          %p326 = pneg %p258
        $region50: #{mlp_forward.1} parent=11 // pred_check_branch
          %328 = sbr.rel (%p326) target = $region52
        $region51: #{mlp_forward.1} parent=11 // pred_region
          _
        $region52: #{mlp_forward.1} parent=11 // pred_fallthru
          _
      $region12: #{mlp_forward.1} parent=5 // pred_fallthru
        _
      %p329 = scmp.lt.s32.totalorder %s22, 2
      // Predicated region
      $region53: #{mlp_forward.1} parent=5 // pred_check
        %p330 = pneg %p329
      $region54: #{mlp_forward.1} parent=5 // pred_check_branch
        %332 = sbr.rel (%p330) target = $region56
      $region55: #{mlp_forward.1} parent=5 // pred_region
        // Predicated region
        $region57: #{mlp_forward.1} parent=55 // pred_check
          %p333 = pneg %p42
        $region58: #{mlp_forward.1} parent=55 // pred_check_branch
          %335 = sbr.rel (%p333) target = $region60
        $region59: #{mlp_forward.1} parent=55 // pred_region
          %p336 = scmp.lt.s32.totalorder %s22, 1
          %s337 = scalar_select %p336, %s22, 1
          %s338 = smul.addr %s337, 4
          %s339 = scalar_lea.vmem %s0, %s338
        $region60: #{mlp_forward.1} parent=55 // pred_fallthru
          _
      $region56: #{mlp_forward.1} parent=5 // pred_fallthru
        _
      %p340 = scmp.le.s32.totalorder 1, %s22
      %p341 = scmp.lt.s32.totalorder %s22, 3
      %p342 = pnand %p340, %p341
      %p343 = pneg %p342
      // Predicated region
      $region61: #{mlp_forward.1} parent=5 // pred_check
        _
      $region62: #{mlp_forward.1} parent=5 // pred_check_branch
        %345 = sbr.rel (%p342) target = $region64
      $region63: #{mlp_forward.1} parent=5 // pred_region
        %s346 = ssub.s32 %s22, 1
        %p347 = scmp.lt.s32.totalorder %s27, 1
        %s348 = scalar_select %p347, %s27, 1
        %s349 = smul.addr %s348, 4
        %s350 = scalar_lea.vmem %s0, %s349
        %p351 = pneg %p48
        %p352 = pneg %p45
        %p353 = pneg %p69
        %p354 = pneg %p66
        %p355 = pneg %p90
        %p356 = pneg %p87
        %p357 = pneg %p111
        %p358 = pneg %p108
        %p359 = pneg %p132
        %p360 = pneg %p129
        %p361 = pneg %p153
        %p362 = pneg %p150
        %p363 = pneg %p174
        %p364 = pneg %p171
        %p365 = pneg %p195
        %p366 = pneg %p192
        %p367 = pneg %p216
        %p368 = pneg %p213
        %p369 = pneg %p237
        %p370 = pneg %p234
        %p371 = pneg %p258
        %p372 = pneg %p255
        %p373 = pneg %p284
        %p374 = pneg %p281
        %s375 = sand.u32 %s271, 1
        %s376 = scalar_lea.sflag [#allocation4], %s375
        %s377 = sand.u32 %s271, 1
        %s378 = scalar_lea.vmem [#allocation3], %s377
        %p379 = scmp.lt.s32.totalorder %s27, 1
        %s380 = scalar_select %p379, %s27, 1
        %s381 = smul.addr %s380, 4
        %s382 = scalar_lea.vmem %s0, %s381
        %v383 = vld [vmem:[%s382] sm:$0x7]
        %v384 = vld [vmem:[%s1] sm:$0xff]
        %v385 = vld [vmem:[%s1 + $0x8] sm:$0xff]
        %v386 = vld [vmem:[%s1 + $0x10] sm:$0xff]
        %v387 = vld [vmem:[%s1 + $0x18] sm:$0xff]
        %v388 = vld [vmem:[%s1 + $0x20] sm:$0xff]
        %v389 = vld [vmem:[%s1 + $0x28] sm:$0xff]
        %v390 = vld [vmem:[%s1 + $0x30] sm:$0xff]
        %v391 = vld [vmem:[%s1 + $0x38] sm:$0xf]
        %393 = vset.pattern.permute.xlu0 0
        %394 = vperm.xlu0 %393, %v384
        %v395 = vpop.permute.xlu0 %394
        %398 = vset.pattern.permute.xlu0 0
        %399 = vperm.xlu0 %398, %v385
        %v400 = vpop.permute.xlu0 %399
        %403 = vset.pattern.permute.xlu0 0
        %404 = vperm.xlu0 %403, %v386
        %v405 = vpop.permute.xlu0 %404
        %408 = vset.pattern.permute.xlu0 0
        %409 = vperm.xlu0 %408, %v387
        %v410 = vpop.permute.xlu0 %409
        %413 = vset.pattern.permute.xlu0 0
        %414 = vperm.xlu0 %413, %v388
        %v415 = vpop.permute.xlu0 %414
        %418 = vset.pattern.permute.xlu0 0
        %419 = vperm.xlu0 %418, %v389
        %v420 = vpop.permute.xlu0 %419
        %423 = vset.pattern.permute.xlu0 0
        %424 = vperm.xlu0 %423, %v390
        %v425 = vpop.permute.xlu0 %424
        %428 = vset.pattern.permute.xlu0 0
        %429 = vperm.xlu0 %428, %v391
        %v430 = vpop.permute.xlu0 %429
        %v432 = vlaneseq
        %v433 = vshrl.u32 %v432, 7
        %v434 = vsub.s32 0, %v433
        %v435 = vrot.slane %v383, %v434
        %v436 = vmul.f32 %v395, %v435
        %v437 = vmul.f32 %v400, %v435
        %v438 = vmul.f32 %v405, %v435
        %v439 = vmul.f32 %v410, %v435
        %v440 = vmul.f32 %v415, %v435
        %v441 = vmul.f32 %v420, %v435
        %v442 = vmul.f32 %v425, %v435
        %v443 = vmul.f32 %v430, %v435
        %444 = vset.pattern.permute.xlu0 1
        %445 = vperm.xlu0 %444, %v384
        %v446 = vpop.permute.xlu0 %445
        %448 = vset.pattern.permute.xlu0 1
        %449 = vperm.xlu0 %448, %v385
        %v450 = vpop.permute.xlu0 %449
        %452 = vset.pattern.permute.xlu0 1
        %453 = vperm.xlu0 %452, %v386
        %v454 = vpop.permute.xlu0 %453
        %456 = vset.pattern.permute.xlu0 1
        %457 = vperm.xlu0 %456, %v387
        %v458 = vpop.permute.xlu0 %457
        %460 = vset.pattern.permute.xlu0 1
        %461 = vperm.xlu0 %460, %v388
        %v462 = vpop.permute.xlu0 %461
        %464 = vset.pattern.permute.xlu0 1
        %465 = vperm.xlu0 %464, %v389
        %v466 = vpop.permute.xlu0 %465
        %468 = vset.pattern.permute.xlu0 1
        %469 = vperm.xlu0 %468, %v390
        %v470 = vpop.permute.xlu0 %469
        %472 = vset.pattern.permute.xlu0 1
        %473 = vperm.xlu0 %472, %v391
        %v474 = vpop.permute.xlu0 %473
        %v476 = vlaneseq
        %v477 = vshrl.u32 %v476, 7
        %v478 = vsub.s32 1, %v477
        %v479 = vrot.slane %v383, %v478
        %v480 = vmul.f32 %v446, %v479
        %v481 = vmul.f32 %v450, %v479
        %v482 = vmul.f32 %v454, %v479
        %v483 = vmul.f32 %v458, %v479
        %v484 = vmul.f32 %v462, %v479
        %v485 = vmul.f32 %v466, %v479
        %v486 = vmul.f32 %v470, %v479
        %v487 = vmul.f32 %v474, %v479
        %v488 = vadd.f32 %v436, %v480
        %v489 = vadd.f32 %v437, %v481
        %v490 = vadd.f32 %v438, %v482
        %v491 = vadd.f32 %v439, %v483
        %v492 = vadd.f32 %v440, %v484
        %v493 = vadd.f32 %v441, %v485
        %v494 = vadd.f32 %v442, %v486
        %v495 = vadd.f32 %v443, %v487
        %496 = vset.pattern.permute.xlu0 2
        %497 = vperm.xlu0 %496, %v384
        %v498 = vpop.permute.xlu0 %497
        %500 = vset.pattern.permute.xlu0 2
        %501 = vperm.xlu0 %500, %v385
        %v502 = vpop.permute.xlu0 %501
        %504 = vset.pattern.permute.xlu0 2
        %505 = vperm.xlu0 %504, %v386
        %v506 = vpop.permute.xlu0 %505
        %508 = vset.pattern.permute.xlu0 2
        %509 = vperm.xlu0 %508, %v387
        %v510 = vpop.permute.xlu0 %509
        %512 = vset.pattern.permute.xlu0 2
        %513 = vperm.xlu0 %512, %v388
        %v514 = vpop.permute.xlu0 %513
        %516 = vset.pattern.permute.xlu0 2
        %517 = vperm.xlu0 %516, %v389
        %v518 = vpop.permute.xlu0 %517
        %520 = vset.pattern.permute.xlu0 2
        %521 = vperm.xlu0 %520, %v390
        %v522 = vpop.permute.xlu0 %521
        %524 = vset.pattern.permute.xlu0 2
        %525 = vperm.xlu0 %524, %v391
        %v526 = vpop.permute.xlu0 %525
        %v528 = vlaneseq
        %v529 = vshrl.u32 %v528, 7
        %v530 = vsub.s32 2, %v529
        %v531 = vrot.slane %v383, %v530
        %v532 = vmul.f32 %v498, %v531
        %v533 = vmul.f32 %v502, %v531
        %v534 = vmul.f32 %v506, %v531
        %v535 = vmul.f32 %v510, %v531
        %v536 = vmul.f32 %v514, %v531
        %v537 = vmul.f32 %v518, %v531
        %v538 = vmul.f32 %v522, %v531
        %v539 = vmul.f32 %v526, %v531
        %v540 = vadd.f32 %v488, %v532
        %v541 = vadd.f32 %v489, %v533
        %v542 = vadd.f32 %v490, %v534
        %v543 = vadd.f32 %v491, %v535
        %v544 = vadd.f32 %v492, %v536
        %v545 = vadd.f32 %v493, %v537
        %v546 = vadd.f32 %v494, %v538
        %v547 = vadd.f32 %v495, %v539
        %v548 = vld [vmem:[%s2] sm:$0xff]
        %v549 = vld [vmem:[%s2 + $0x8] sm:$0xff]
        %v550 = vld [vmem:[%s2 + $0x10] sm:$0xff]
        %v551 = vld [vmem:[%s2 + $0x18] sm:$0xff]
        %v552 = vld [vmem:[%s2 + $0x20] sm:$0xff]
        %v553 = vld [vmem:[%s2 + $0x28] sm:$0xff]
        %v554 = vld [vmem:[%s2 + $0x30] sm:$0xff]
        %v555 = vld [vmem:[%s2 + $0x38] sm:$0xf]
        %557 = vset.pattern.permute.xlu0 0
        %558 = vperm.xlu0 %557, %v548
        %v559 = vpop.permute.xlu0 %558
        %562 = vset.pattern.permute.xlu0 0
        %563 = vperm.xlu0 %562, %v549
        %v564 = vpop.permute.xlu0 %563
        %567 = vset.pattern.permute.xlu0 0
        %568 = vperm.xlu0 %567, %v550
        %v569 = vpop.permute.xlu0 %568
        %572 = vset.pattern.permute.xlu0 0
        %573 = vperm.xlu0 %572, %v551
        %v574 = vpop.permute.xlu0 %573
        %577 = vset.pattern.permute.xlu0 0
        %578 = vperm.xlu0 %577, %v552
        %v579 = vpop.permute.xlu0 %578
        %582 = vset.pattern.permute.xlu0 0
        %583 = vperm.xlu0 %582, %v553
        %v584 = vpop.permute.xlu0 %583
        %587 = vset.pattern.permute.xlu0 0
        %588 = vperm.xlu0 %587, %v554
        %v589 = vpop.permute.xlu0 %588
        %592 = vset.pattern.permute.xlu0 0
        %593 = vperm.xlu0 %592, %v555
        %v594 = vpop.permute.xlu0 %593
        %v596 = vadd.f32 %v540, %v559
        %v597 = vadd.f32 %v541, %v564
        %v598 = vadd.f32 %v542, %v569
        %v599 = vadd.f32 %v543, %v574
        %v600 = vadd.f32 %v544, %v579
        %v601 = vadd.f32 %v545, %v584
        %v602 = vadd.f32 %v546, %v589
        %v603 = vadd.f32 %v547, %v594
        %v604 = vtanh.pop %v596
        %v605 = vtanh.pop %v597
        %v606 = vtanh.pop %v598
        %v607 = vtanh.pop %v599
        %v608 = vtanh.pop %v600
        %v609 = vtanh.pop %v601
        %v610 = vtanh.pop %v602
        %v611 = vtanh.pop %v603
        %v612 = vld [vmem:[%s3] sm:$0xff]
        %v613 = vld [vmem:[%s3 + $0x8] sm:$0xff]
        %v614 = vld [vmem:[%s3 + $0x10] sm:$0xff]
        %v615 = vld [vmem:[%s3 + $0x18] sm:$0xff]
        %v616 = vld [vmem:[%s3 + $0x20] sm:$0xff]
        %v617 = vld [vmem:[%s3 + $0x28] sm:$0xff]
        %v618 = vld [vmem:[%s3 + $0x30] sm:$0xff]
        %v619 = vld [vmem:[%s3 + $0x38] sm:$0xff]
        %v620 = vld [vmem:[%s3 + $0x40] sm:$0xff]
        %v621 = vld [vmem:[%s3 + $0x48] sm:$0xff]
        %v622 = vld [vmem:[%s3 + $0x50] sm:$0xff]
        %v623 = vld [vmem:[%s3 + $0x58] sm:$0xff]
        %v624 = vld [vmem:[%s3 + $0x60] sm:$0xff]
        %v625 = vld [vmem:[%s3 + $0x68] sm:$0xff]
        %v626 = vld [vmem:[%s3 + $0x70] sm:$0xff]
        %v627 = vld [vmem:[%s4] sm:$0xff]
        %v628 = vld [vmem:[%s4 + $0x8] sm:$0xff]
        %v629 = vld [vmem:[%s4 + $0x10] sm:$0xff]
        %v630 = vld [vmem:[%s4 + $0x18] sm:$0xff]
        %v631 = vld [vmem:[%s4 + $0x20] sm:$0xff]
        %v632 = vld [vmem:[%s4 + $0x28] sm:$0xff]
        %v633 = vld [vmem:[%s4 + $0x30] sm:$0xff]
        %v634 = vld [vmem:[%s4 + $0x38] sm:$0xff]
        %v635 = vld [vmem:[%s4 + $0x40] sm:$0xff]
        %v636 = vld [vmem:[%s4 + $0x48] sm:$0xff]
        %v637 = vld [vmem:[%s4 + $0x50] sm:$0xff]
        %v638 = vld [vmem:[%s4 + $0x58] sm:$0xff]
        %v639 = vld [vmem:[%s4 + $0x60] sm:$0xff]
        %v640 = vld [vmem:[%s4 + $0x68] sm:$0xff]
        %v641 = vld [vmem:[%s4 + $0x70] sm:$0xff]
        %643 = vset.pattern.permute.xlu0 0
        %644 = vperm.xlu0 %643, %v627
        %v645 = vpop.permute.xlu0 %644
        %648 = vset.pattern.permute.xlu0 0
        %649 = vperm.xlu0 %648, %v628
        %v650 = vpop.permute.xlu0 %649
        %653 = vset.pattern.permute.xlu0 0
        %654 = vperm.xlu0 %653, %v629
        %v655 = vpop.permute.xlu0 %654
        %658 = vset.pattern.permute.xlu0 0
        %659 = vperm.xlu0 %658, %v630
        %v660 = vpop.permute.xlu0 %659
        %663 = vset.pattern.permute.xlu0 0
        %664 = vperm.xlu0 %663, %v631
        %v665 = vpop.permute.xlu0 %664
        %668 = vset.pattern.permute.xlu0 0
        %669 = vperm.xlu0 %668, %v632
        %v670 = vpop.permute.xlu0 %669
        %673 = vset.pattern.permute.xlu0 0
        %674 = vperm.xlu0 %673, %v633
        %v675 = vpop.permute.xlu0 %674
        %678 = vset.pattern.permute.xlu0 0
        %679 = vperm.xlu0 %678, %v634
        %v680 = vpop.permute.xlu0 %679
        %683 = vset.pattern.permute.xlu0 0
        %684 = vperm.xlu0 %683, %v635
        %v685 = vpop.permute.xlu0 %684
        %688 = vset.pattern.permute.xlu0 0
        %689 = vperm.xlu0 %688, %v636
        %v690 = vpop.permute.xlu0 %689
        %693 = vset.pattern.permute.xlu0 0
        %694 = vperm.xlu0 %693, %v637
        %v695 = vpop.permute.xlu0 %694
        %698 = vset.pattern.permute.xlu0 0
        %699 = vperm.xlu0 %698, %v638
        %v700 = vpop.permute.xlu0 %699
        %703 = vset.pattern.permute.xlu0 0
        %704 = vperm.xlu0 %703, %v639
        %v705 = vpop.permute.xlu0 %704
        %708 = vset.pattern.permute.xlu0 0
        %709 = vperm.xlu0 %708, %v640
        %v710 = vpop.permute.xlu0 %709
        %713 = vset.pattern.permute.xlu0 0
        %714 = vperm.xlu0 %713, %v641
        %v715 = vpop.permute.xlu0 %714
        %vm717 = vcmask 490496
        %v719 = vsel %vm717, %v612, 0
        %v722 = vsel %vm717, %v613, 0
        %v725 = vsel %vm717, %v614, 0
        %v728 = vsel %vm717, %v615, 0
        %v731 = vsel %vm717, %v616, 0
        %v734 = vsel %vm717, %v617, 0
        %v737 = vsel %vm717, %v618, 0
        %v740 = vsel %vm717, %v619, 0
        %v743 = vsel %vm717, %v620, 0
        %v746 = vsel %vm717, %v621, 0
        %v749 = vsel %vm717, %v622, 0
        %v752 = vsel %vm717, %v623, 0
        %v755 = vsel %vm717, %v624, 0
        %v758 = vsel %vm717, %v625, 0
        %v761 = vsel %vm717, %v626, 0
        %vm763 = vcmask 1043456
        %v765 = vsel %vm763, %v611, 0
        %767 = vmatprep.subr.mxu0 0.0
        %768 = vmatpush1.msra.mxu0 0.0
        %769 = vmatprep.subr.mxu0 0.0
        %770 = vmatpush1.msra.mxu0 0.0
        %771 = vmatprep.subr.mxu0 0.0
        %772 = vmatpush1.msra.mxu0 0.0
        %773 = vmatprep.subr.mxu0 0.0
        %774 = vmatpush1.msra.mxu0 0.0
        %775 = vmatprep.subr.mxu0 0.0
        %776 = vmatpush1.msra.mxu0 0.0
        %777 = vmatprep.subr.mxu0 0.0
        %778 = vmatpush1.msra.mxu0 0.0
        %779 = vmatprep.subr.mxu0 0.0
        %780 = vmatpush1.msra.mxu0 0.0
        %781 = vmatprep.subr.mxu0 0.0
        %782 = vmatpush1.msra.mxu0 0.0
        %783 = vmatprep.subr.mxu0 0.0
        %784 = vmatpush1.msra.mxu0 %v765
        %785 = vmatprep.subr.mxu0 0.0
        %786 = vmatpush1.msra.mxu0 %v610
        %787 = vmatprep.subr.mxu0 0.0
        %788 = vmatpush1.msra.mxu0 %v609
        %789 = vmatprep.subr.mxu0 0.0
        %790 = vmatpush1.msra.mxu0 %v608
        %791 = vmatprep.subr.mxu0 0.0
        %792 = vmatpush1.msra.mxu0 %v607
        %793 = vmatprep.subr.mxu0 0.0
        %794 = vmatpush1.msra.mxu0 %v606
        %795 = vmatprep.subr.mxu0 0.0
        %796 = vmatpush1.msra.mxu0 %v605
        %797 = vmatprep.subr.mxu0 0.0
        %798 = vmatpush1.msra.mxu0 %v604
        %799 = vmatprep.subr.mxu0 0.0
        %800 = vmatpush2.msra.mxu0 0.0
        %801 = vmatprep.subr.mxu0 0.0
        %802 = vmatpush2.msra.mxu0 0.0
        %803 = vmatprep.subr.mxu0 0.0
        %804 = vmatpush2.msra.mxu0 0.0
        %805 = vmatprep.subr.mxu0 0.0
        %806 = vmatpush2.msra.mxu0 0.0
        %807 = vmatprep.subr.mxu0 0.0
        %808 = vmatpush2.msra.mxu0 0.0
        %809 = vmatprep.subr.mxu0 0.0
        %810 = vmatpush2.msra.mxu0 0.0
        %811 = vmatprep.subr.mxu0 0.0
        %812 = vmatpush2.msra.mxu0 0.0
        %813 = vmatprep.subr.mxu0 0.0
        %814 = vmatpush2.msra.mxu0 0.0
        %815 = vmatprep.subr.mxu0 0.0
        %816 = vmatpush2.msra.mxu0 0.0
        %817 = vmatprep.subr.mxu0 0.0
        %818 = vmatpush2.msra.mxu0 0.0
        %819 = vmatprep.subr.mxu0 0.0
        %820 = vmatpush2.msra.mxu0 0.0
        %821 = vmatprep.subr.mxu0 0.0
        %822 = vmatpush2.msra.mxu0 0.0
        %823 = vmatprep.subr.mxu0 0.0
        %824 = vmatpush2.msra.mxu0 0.0
        %825 = vmatprep.subr.mxu0 0.0
        %826 = vmatpush2.msra.mxu0 0.0
        %827 = vmatprep.subr.mxu0 0.0
        %828 = vmatpush2.msra.mxu0 0.0
        %829 = vmatprep.subr.mxu0 0.0
        %830 = vmatpush2.msra.mxu0 0.0
        %831 = vmatprep.mubr.f32.mxu0 0.0
        %832 = vmatmul.mubr.f32.gmra.mxu0 %v719
        %v833 = vpop.f32.mrf.mxu0
        %v834 = vadd.f32 %v645, %v833
        %v835 = vpop.f32.mrf.mxu0
        %836 = vmatprep.mubr.f32.mxu0 0.0
        %837 = vmatmul.mubr.f32.gmra.mxu0 %v722
        %v838 = vpop.f32.mrf.mxu0
        %v839 = vadd.f32 %v650, %v838
        %v840 = vpop.f32.mrf.mxu0
        %841 = vmatprep.mubr.f32.mxu0 0.0
        %842 = vmatmul.mubr.f32.gmra.mxu0 %v725
        %v843 = vpop.f32.mrf.mxu0
        %v844 = vadd.f32 %v655, %v843
        %v845 = vpop.f32.mrf.mxu0
        %846 = vmatprep.mubr.f32.mxu0 0.0
        %847 = vmatmul.mubr.f32.gmra.mxu0 %v728
        %v848 = vpop.f32.mrf.mxu0
        %v849 = vadd.f32 %v660, %v848
        %v850 = vpop.f32.mrf.mxu0
        %851 = vmatprep.mubr.f32.mxu0 0.0
        %852 = vmatmul.mubr.f32.gmra.mxu0 %v731
        %v853 = vpop.f32.mrf.mxu0
        %v854 = vadd.f32 %v665, %v853
        %v855 = vpop.f32.mrf.mxu0
        %856 = vmatprep.mubr.f32.mxu0 0.0
        %857 = vmatmul.mubr.f32.gmra.mxu0 %v734
        %v858 = vpop.f32.mrf.mxu0
        %v859 = vadd.f32 %v670, %v858
        %v860 = vpop.f32.mrf.mxu0
        %861 = vmatprep.mubr.f32.mxu0 0.0
        %862 = vmatmul.mubr.f32.gmra.mxu0 %v737
        %v863 = vpop.f32.mrf.mxu0
        %v864 = vadd.f32 %v675, %v863
        %v865 = vpop.f32.mrf.mxu0
        %866 = vmatprep.mubr.f32.mxu0 0.0
        %867 = vmatmul.mubr.f32.gmra.mxu0 %v740
        %v868 = vpop.f32.mrf.mxu0
        %v869 = vadd.f32 %v680, %v868
        %v870 = vpop.f32.mrf.mxu0
        %871 = vmatprep.mubr.f32.mxu0 0.0
        %872 = vmatmul.mubr.f32.gmra.mxu0 %v743
        %v873 = vpop.f32.mrf.mxu0
        %v874 = vadd.f32 %v685, %v873
        %v875 = vpop.f32.mrf.mxu0
        %876 = vmatprep.mubr.f32.mxu0 0.0
        %877 = vmatmul.mubr.f32.gmra.mxu0 %v746
        %v878 = vpop.f32.mrf.mxu0
        %v879 = vadd.f32 %v690, %v878
        %v880 = vpop.f32.mrf.mxu0
        %881 = vmatprep.mubr.f32.mxu0 0.0
        %882 = vmatmul.mubr.f32.gmra.mxu0 %v749
        %v883 = vpop.f32.mrf.mxu0
        %v884 = vadd.f32 %v695, %v883
        %v885 = vpop.f32.mrf.mxu0
        %886 = vmatprep.mubr.f32.mxu0 0.0
        %887 = vmatmul.mubr.f32.gmra.mxu0 %v752
        %v888 = vpop.f32.mrf.mxu0
        %v889 = vadd.f32 %v700, %v888
        %v890 = vpop.f32.mrf.mxu0
        %891 = vmatprep.mubr.f32.mxu0 0.0
        %892 = vmatmul.mubr.f32.gmra.mxu0 %v755
        %v893 = vpop.f32.mrf.mxu0
        %v894 = vadd.f32 %v705, %v893
        %v895 = vpop.f32.mrf.mxu0
        %896 = vmatprep.mubr.f32.mxu0 0.0
        %897 = vmatmul.mubr.f32.gmra.mxu0 %v758
        %v898 = vpop.f32.mrf.mxu0
        %v899 = vadd.f32 %v710, %v898
        %v900 = vpop.f32.mrf.mxu0
        %901 = vmatprep.mubr.f32.mxu0 0.0
        %902 = vmatmul.mubr.f32.gmra.mxu0 %v761
        %v903 = vpop.f32.mrf.mxu0
        %v904 = vadd.f32 %v715, %v903
        %v905 = vpop.f32.mrf.mxu0
        %906 = vdwg.mxu0
        %v907 = vmax.f32 %v834, 0.0
        %v908 = vmax.f32 %v839, 0.0
        %v909 = vmax.f32 %v844, 0.0
        %v910 = vmax.f32 %v849, 0.0
        %v911 = vmax.f32 %v854, 0.0
        %v912 = vmax.f32 %v859, 0.0
        %v913 = vmax.f32 %v864, 0.0
        %v914 = vmax.f32 %v869, 0.0
        %v915 = vmax.f32 %v874, 0.0
        %v916 = vmax.f32 %v879, 0.0
        %v917 = vmax.f32 %v884, 0.0
        %v918 = vmax.f32 %v889, 0.0
        %v919 = vmax.f32 %v894, 0.0
        %v920 = vmax.f32 %v899, 0.0
        %v921 = vmax.f32 %v904, 0.0
        %v922 = vld [vmem:[%s5] sm:$0xff]
        %v923 = vld [vmem:[%s5 + $0x8] sm:$0xff]
        %v924 = vld [vmem:[%s5 + $0x10] sm:$0xff]
        %v925 = vld [vmem:[%s5 + $0x18] sm:$0xff]
        %v926 = vld [vmem:[%s5 + $0x20] sm:$0xff]
        %v927 = vld [vmem:[%s5 + $0x28] sm:$0xff]
        %v928 = vld [vmem:[%s5 + $0x30] sm:$0xff]
        %v929 = vld [vmem:[%s5 + $0x38] sm:$0xf]
        %v930 = vld [vmem:[%s6] sm:$0xff]
        %v931 = vld [vmem:[%s6 + $0x8] sm:$0xff]
        %v932 = vld [vmem:[%s6 + $0x10] sm:$0xff]
        %v933 = vld [vmem:[%s6 + $0x18] sm:$0xff]
        %v934 = vld [vmem:[%s6 + $0x20] sm:$0xff]
        %v935 = vld [vmem:[%s6 + $0x28] sm:$0xff]
        %v936 = vld [vmem:[%s6 + $0x30] sm:$0xff]
        %v937 = vld [vmem:[%s6 + $0x38] sm:$0xf]
        %939 = vset.pattern.permute.xlu0 0
        %940 = vperm.xlu0 %939, %v930
        %v941 = vpop.permute.xlu0 %940
        %944 = vset.pattern.permute.xlu0 0
        %945 = vperm.xlu0 %944, %v931
        %v946 = vpop.permute.xlu0 %945
        %949 = vset.pattern.permute.xlu0 0
        %950 = vperm.xlu0 %949, %v932
        %v951 = vpop.permute.xlu0 %950
        %954 = vset.pattern.permute.xlu0 0
        %955 = vperm.xlu0 %954, %v933
        %v956 = vpop.permute.xlu0 %955
        %959 = vset.pattern.permute.xlu0 0
        %960 = vperm.xlu0 %959, %v934
        %v961 = vpop.permute.xlu0 %960
        %964 = vset.pattern.permute.xlu0 0
        %965 = vperm.xlu0 %964, %v935
        %v966 = vpop.permute.xlu0 %965
        %969 = vset.pattern.permute.xlu0 0
        %970 = vperm.xlu0 %969, %v936
        %v971 = vpop.permute.xlu0 %970
        %974 = vset.pattern.permute.xlu0 0
        %975 = vperm.xlu0 %974, %v937
        %v976 = vpop.permute.xlu0 %975
        %vm978 = vcmask 982016
        %v980 = vsel %vm978, %v922, 0
        %v983 = vsel %vm978, %v923, 0
        %v986 = vsel %vm978, %v924, 0
        %v989 = vsel %vm978, %v925, 0
        %v992 = vsel %vm978, %v926, 0
        %v995 = vsel %vm978, %v927, 0
        %v998 = vsel %vm978, %v928, 0
        %v1001 = vsel %vm978, %v929, 0
        %1003 = vmatprep.subr.mxu0 0.0
        %1004 = vmatpush1.msra.mxu0 0.0
        %1005 = vmatprep.subr.mxu0 0.0
        %1006 = vmatpush1.msra.mxu0 %v921
        %1007 = vmatprep.subr.mxu0 0.0
        %1008 = vmatpush1.msra.mxu0 %v920
        %1009 = vmatprep.subr.mxu0 0.0
        %1010 = vmatpush1.msra.mxu0 %v919
        %1011 = vmatprep.subr.mxu0 0.0
        %1012 = vmatpush1.msra.mxu0 %v918
        %1013 = vmatprep.subr.mxu0 0.0
        %1014 = vmatpush1.msra.mxu0 %v917
        %1015 = vmatprep.subr.mxu0 0.0
        %1016 = vmatpush1.msra.mxu0 %v916
        %1017 = vmatprep.subr.mxu0 0.0
        %1018 = vmatpush1.msra.mxu0 %v915
        %1019 = vmatprep.subr.mxu0 0.0
        %1020 = vmatpush1.msra.mxu0 %v914
        %1021 = vmatprep.subr.mxu0 0.0
        %1022 = vmatpush1.msra.mxu0 %v913
        %1023 = vmatprep.subr.mxu0 0.0
        %1024 = vmatpush1.msra.mxu0 %v912
        %1025 = vmatprep.subr.mxu0 0.0
        %1026 = vmatpush1.msra.mxu0 %v911
        %1027 = vmatprep.subr.mxu0 0.0
        %1028 = vmatpush1.msra.mxu0 %v910
        %1029 = vmatprep.subr.mxu0 0.0
        %1030 = vmatpush1.msra.mxu0 %v909
        %1031 = vmatprep.subr.mxu0 0.0
        %1032 = vmatpush1.msra.mxu0 %v908
        %1033 = vmatprep.subr.mxu0 0.0
        %1034 = vmatpush1.msra.mxu0 %v907
        %1035 = vmatprep.subr.mxu0 0.0
        %1036 = vmatpush2.msra.mxu0 0.0
        %1037 = vmatprep.subr.mxu0 0.0
        %1038 = vmatpush2.msra.mxu0 0.0
        %1039 = vmatprep.subr.mxu0 0.0
        %1040 = vmatpush2.msra.mxu0 0.0
        %1041 = vmatprep.subr.mxu0 0.0
        %1042 = vmatpush2.msra.mxu0 0.0
        %1043 = vmatprep.subr.mxu0 0.0
        %1044 = vmatpush2.msra.mxu0 0.0
        %1045 = vmatprep.subr.mxu0 0.0
        %1046 = vmatpush2.msra.mxu0 0.0
        %1047 = vmatprep.subr.mxu0 0.0
        %1048 = vmatpush2.msra.mxu0 0.0
        %1049 = vmatprep.subr.mxu0 0.0
        %1050 = vmatpush2.msra.mxu0 0.0
        %1051 = vmatprep.subr.mxu0 0.0
        %1052 = vmatpush2.msra.mxu0 0.0
        %1053 = vmatprep.subr.mxu0 0.0
        %1054 = vmatpush2.msra.mxu0 0.0
        %1055 = vmatprep.subr.mxu0 0.0
        %1056 = vmatpush2.msra.mxu0 0.0
        %1057 = vmatprep.subr.mxu0 0.0
        %1058 = vmatpush2.msra.mxu0 0.0
        %1059 = vmatprep.subr.mxu0 0.0
        %1060 = vmatpush2.msra.mxu0 0.0
        %1061 = vmatprep.subr.mxu0 0.0
        %1062 = vmatpush2.msra.mxu0 0.0
        %1063 = vmatprep.subr.mxu0 0.0
        %1064 = vmatpush2.msra.mxu0 0.0
        %1065 = vmatprep.subr.mxu0 0.0
        %1066 = vmatpush2.msra.mxu0 0.0
        %1067 = vmatprep.mubr.f32.mxu0 0.0
        %1068 = vmatmul.mubr.f32.gmra.mxu0 %v980
        %v1069 = vpop.f32.mrf.mxu0
        %v1070 = vadd.f32 %v941, %v1069
        %v1071 = vpop.f32.mrf.mxu0
        %1072 = vmatprep.mubr.f32.mxu0 0.0
        %1073 = vmatmul.mubr.f32.gmra.mxu0 %v983
        %v1074 = vpop.f32.mrf.mxu0
        %v1075 = vadd.f32 %v946, %v1074
        %v1076 = vpop.f32.mrf.mxu0
        %1077 = vmatprep.mubr.f32.mxu0 0.0
        %1078 = vmatmul.mubr.f32.gmra.mxu0 %v986
        %v1079 = vpop.f32.mrf.mxu0
        %v1080 = vadd.f32 %v951, %v1079
        %v1081 = vpop.f32.mrf.mxu0
        %1082 = vmatprep.mubr.f32.mxu0 0.0
        %1083 = vmatmul.mubr.f32.gmra.mxu0 %v989
        %v1084 = vpop.f32.mrf.mxu0
        %v1085 = vadd.f32 %v956, %v1084
        %v1086 = vpop.f32.mrf.mxu0
        %1087 = vmatprep.mubr.f32.mxu0 0.0
        %1088 = vmatmul.mubr.f32.gmra.mxu0 %v992
        %v1089 = vpop.f32.mrf.mxu0
        %v1090 = vadd.f32 %v961, %v1089
        %v1091 = vpop.f32.mrf.mxu0
        %1092 = vmatprep.mubr.f32.mxu0 0.0
        %1093 = vmatmul.mubr.f32.gmra.mxu0 %v995
        %v1094 = vpop.f32.mrf.mxu0
        %v1095 = vadd.f32 %v966, %v1094
        %v1096 = vpop.f32.mrf.mxu0
        %1097 = vmatprep.mubr.f32.mxu0 0.0
        %1098 = vmatmul.mubr.f32.gmra.mxu0 %v998
        %v1099 = vpop.f32.mrf.mxu0
        %v1100 = vadd.f32 %v971, %v1099
        %v1101 = vpop.f32.mrf.mxu0
        %1102 = vmatprep.mubr.f32.mxu0 0.0
        %1103 = vmatmul.mubr.f32.gmra.mxu0 %v1001
        %v1104 = vpop.f32.mrf.mxu0
        %v1105 = vadd.f32 %v976, %v1104
        %v1106 = vpop.f32.mrf.mxu0
        %1107 = vdwg.mxu0
        %v1108 = vmax.f32 %v1070, 0.0
        %v1109 = vmax.f32 %v1075, 0.0
        %v1110 = vmax.f32 %v1080, 0.0
        %v1111 = vmax.f32 %v1085, 0.0
        %v1112 = vmax.f32 %v1090, 0.0
        %v1113 = vmax.f32 %v1095, 0.0
        %v1114 = vmax.f32 %v1100, 0.0
        %v1115 = vmax.f32 %v1105, 0.0
        %v1116 = vld [vmem:[%s7] sm:$0xff]
        %v1117 = vld [vmem:[%s7 + $0x8] sm:$0xff]
        %v1118 = vld [vmem:[%s7 + $0x10] sm:$0xff]
        %v1119 = vld [vmem:[%s7 + $0x18] sm:$0x3f]
        %v1120 = vld [vmem:[%s8] sm:$0xff]
        %v1121 = vld [vmem:[%s8 + $0x8] sm:$0xff]
        %v1122 = vld [vmem:[%s8 + $0x10] sm:$0xff]
        %v1123 = vld [vmem:[%s8 + $0x18] sm:$0x3f]
        %1125 = vset.pattern.permute.xlu0 0
        %1126 = vperm.xlu0 %1125, %v1120
        %v1127 = vpop.permute.xlu0 %1126
        %1130 = vset.pattern.permute.xlu0 0
        %1131 = vperm.xlu0 %1130, %v1121
        %v1132 = vpop.permute.xlu0 %1131
        %1135 = vset.pattern.permute.xlu0 0
        %1136 = vperm.xlu0 %1135, %v1122
        %v1137 = vpop.permute.xlu0 %1136
        %1140 = vset.pattern.permute.xlu0 0
        %1141 = vperm.xlu0 %1140, %v1123
        %v1142 = vpop.permute.xlu0 %1141
        %v1145 = vsel %vm717, %v1116, 0
        %v1148 = vsel %vm717, %v1117, 0
        %v1151 = vsel %vm717, %v1118, 0
        %v1154 = vsel %vm717, %v1119, 0
        %v1157 = vsel %vm763, %v1115, 0
        %1159 = vmatprep.subr.mxu0 0.0
        %1160 = vmatpush1.msra.mxu0 0.0
        %1161 = vmatprep.subr.mxu0 0.0
        %1162 = vmatpush1.msra.mxu0 0.0
        %1163 = vmatprep.subr.mxu0 0.0
        %1164 = vmatpush1.msra.mxu0 0.0
        %1165 = vmatprep.subr.mxu0 0.0
        %1166 = vmatpush1.msra.mxu0 0.0
        %1167 = vmatprep.subr.mxu0 0.0
        %1168 = vmatpush1.msra.mxu0 0.0
        %1169 = vmatprep.subr.mxu0 0.0
        %1170 = vmatpush1.msra.mxu0 0.0
        %1171 = vmatprep.subr.mxu0 0.0
        %1172 = vmatpush1.msra.mxu0 0.0
        %1173 = vmatprep.subr.mxu0 0.0
        %1174 = vmatpush1.msra.mxu0 0.0
        %1175 = vmatprep.subr.mxu0 0.0
        %1176 = vmatpush1.msra.mxu0 %v1157
        %1177 = vmatprep.subr.mxu0 0.0
        %1178 = vmatpush1.msra.mxu0 %v1114
        %1179 = vmatprep.subr.mxu0 0.0
        %1180 = vmatpush1.msra.mxu0 %v1113
        %1181 = vmatprep.subr.mxu0 0.0
        %1182 = vmatpush1.msra.mxu0 %v1112
        %1183 = vmatprep.subr.mxu0 0.0
        %1184 = vmatpush1.msra.mxu0 %v1111
        %1185 = vmatprep.subr.mxu0 0.0
        %1186 = vmatpush1.msra.mxu0 %v1110
        %1187 = vmatprep.subr.mxu0 0.0
        %1188 = vmatpush1.msra.mxu0 %v1109
        %1189 = vmatprep.subr.mxu0 0.0
        %1190 = vmatpush1.msra.mxu0 %v1108
        %1191 = vmatprep.subr.mxu0 0.0
        %1192 = vmatpush2.msra.mxu0 0.0
        %1193 = vmatprep.subr.mxu0 0.0
        %1194 = vmatpush2.msra.mxu0 0.0
        %1195 = vmatprep.subr.mxu0 0.0
        %1196 = vmatpush2.msra.mxu0 0.0
        %1197 = vmatprep.subr.mxu0 0.0
        %1198 = vmatpush2.msra.mxu0 0.0
        %1199 = vmatprep.subr.mxu0 0.0
        %1200 = vmatpush2.msra.mxu0 0.0
        %1201 = vmatprep.subr.mxu0 0.0
        %1202 = vmatpush2.msra.mxu0 0.0
        %1203 = vmatprep.subr.mxu0 0.0
        %1204 = vmatpush2.msra.mxu0 0.0
        %1205 = vmatprep.subr.mxu0 0.0
        %1206 = vmatpush2.msra.mxu0 0.0
        %1207 = vmatprep.subr.mxu0 0.0
        %1208 = vmatpush2.msra.mxu0 0.0
        %1209 = vmatprep.subr.mxu0 0.0
        %1210 = vmatpush2.msra.mxu0 0.0
        %1211 = vmatprep.subr.mxu0 0.0
        %1212 = vmatpush2.msra.mxu0 0.0
        %1213 = vmatprep.subr.mxu0 0.0
        %1214 = vmatpush2.msra.mxu0 0.0
        %1215 = vmatprep.subr.mxu0 0.0
        %1216 = vmatpush2.msra.mxu0 0.0
        %1217 = vmatprep.subr.mxu0 0.0
        %1218 = vmatpush2.msra.mxu0 0.0
        %1219 = vmatprep.subr.mxu0 0.0
        %1220 = vmatpush2.msra.mxu0 0.0
        %1221 = vmatprep.subr.mxu0 0.0
        %1222 = vmatpush2.msra.mxu0 0.0
        %1223 = vmatprep.mubr.f32.mxu0 0.0
        %1224 = vmatmul.mubr.f32.gmra.mxu0 %v1145
        %v1225 = vpop.f32.mrf.mxu0
        %v1226 = vadd.f32 %v1127, %v1225
        %v1227 = vpop.f32.mrf.mxu0
        %1228 = vmatprep.mubr.f32.mxu0 0.0
        %1229 = vmatmul.mubr.f32.gmra.mxu0 %v1148
        %v1230 = vpop.f32.mrf.mxu0
        %v1231 = vadd.f32 %v1132, %v1230
        %v1232 = vpop.f32.mrf.mxu0
        %1233 = vmatprep.mubr.f32.mxu0 0.0
        %1234 = vmatmul.mubr.f32.gmra.mxu0 %v1151
        %v1235 = vpop.f32.mrf.mxu0
        %v1236 = vadd.f32 %v1137, %v1235
        %v1237 = vpop.f32.mrf.mxu0
        %1238 = vmatprep.mubr.f32.mxu0 0.0
        %1239 = vmatmul.mubr.f32.gmra.mxu0 %v1154
        %v1240 = vpop.f32.mrf.mxu0
        %v1241 = vadd.f32 %v1142, %v1240
        %v1242 = vpop.f32.mrf.mxu0
        %1243 = vdwg.mxu0
        %v1244 = vmax.f32 %v1226, 0.0
        %v1245 = vmax.f32 %v1231, 0.0
        %v1246 = vmax.f32 %v1236, 0.0
        %v1247 = vmax.f32 %v1241, 0.0
        %v1248 = vld [vmem:[%s9] sm:$0xff]
        %v1249 = vld [vmem:[%s9 + $0x8] sm:$0xff]
        %v1250 = vld [vmem:[%s9 + $0x10] sm:$0xff]
        %v1251 = vld [vmem:[%s9 + $0x18] sm:$0x3f]
        %1253 = vset.pattern.permute.xlu0 0
        %1254 = vperm.xlu0 %1253, %v1248
        %v1255 = vpop.permute.xlu0 %1254
        %1258 = vset.pattern.permute.xlu0 0
        %1259 = vperm.xlu0 %1258, %v1249
        %v1260 = vpop.permute.xlu0 %1259
        %1263 = vset.pattern.permute.xlu0 0
        %1264 = vperm.xlu0 %1263, %v1250
        %v1265 = vpop.permute.xlu0 %1264
        %1268 = vset.pattern.permute.xlu0 0
        %1269 = vperm.xlu0 %1268, %v1251
        %v1270 = vpop.permute.xlu0 %1269
        %v1272 = vmul.f32 %v1244, %v1255
        %v1273 = vmul.f32 %v1245, %v1260
        %v1274 = vmul.f32 %v1246, %v1265
        %v1275 = vmul.f32 %v1247, %v1270
        %v1276 = vadd.f32 %v1272, %v1273
        %v1277 = vadd.f32 %v1276, %v1274
        %vm1278 = vcmask 1045504
        %v1279 = vsel %vm1278, %v1275, 0.0
        %v1280 = vadd.f32 %v1277, %v1279
        %v1281 = vrot.slane %v1280, 4
        %v1282 = vadd.f32 %v1280, %v1281
        %v1283 = vrot.slane %v1282, 2
        %v1284 = vadd.f32 %v1282, %v1283
        %v1285 = vrot.slane %v1284, 1
        %v1286 = vadd.f32 %v1284, %v1285
        %v1287 = vld [vmem:[#allocation2] sm:$0x1]
        %1289 = vset.pattern.permute.xlu0 0
        %1290 = vperm.xlu0 %1289, %v1287
        %v1291 = vpop.permute.xlu0 %1290
        %v1293 = vlaneseq
        %v1294 = vshrl.u32 %v1293, 7
        %v1295 = vsub.s32 0, %v1294
        %v1296 = vrot.slane %v1291, %v1295
        %v1297 = vadd.f32 %v1286, %v1296
        %1298 = vst [vmem:[%s378] sm:$0x1] %v1297
        %s1299 = sand.u32 %s271, 1
        %s1300 = scalar_lea.sflag [#allocation4], %s1299
        %s1301 = sand.u32 %s271, 1
        %s1302 = scalar_lea.vmem [#allocation3], %s1301
        // Predicated region
        $region65: #{mlp_forward.1} parent=63 // pred_check
          %p1303 = pneg %p281
        $region66: #{mlp_forward.1} parent=63 // pred_check_branch
          %1305 = sbr.rel (%p1303) target = $region68
        $region67: #{mlp_forward.1} parent=63 // pred_region
          %s1307 = ssub.s32 16, 16
          %1308 = vsyncadd %s1300, %s1307
          %s1309 = smul.addr %s27, 16
          %s1310 = scalar_lea.hbm %s11, %s1309
          %s1312 = sshll.u32 %s1302, 4
          %s1313 = int_to_ptr.vmem [resolvable:$true] %s1312
          %1315 = dma.vmem_to_hbm [thread:$0]  %s1313, 16, %s1310, %s1300
        $region68: #{mlp_forward.1} parent=63 // pred_fallthru
          _
      $region64: #{mlp_forward.1} parent=5 // pred_fallthru
        _
      %p1316 = scmp.le.s32.totalorder 2, %s22
      // Predicated region
      $region69: #{mlp_forward.1} parent=5 // pred_check
        %p1317 = pneg %p1316
      $region70: #{mlp_forward.1} parent=5 // pred_check_branch
        %1319 = sbr.rel (%p1317) target = $region72
      $region71: #{mlp_forward.1} parent=5 // pred_region
        %s1320 = ssub.s32 %s22, 2
        // Predicated region
        $region73: #{mlp_forward.1} parent=71 // pred_check
          %p1321 = pneg %p287
        $region74: #{mlp_forward.1} parent=71 // pred_check_branch
          %1323 = sbr.rel (%p1321) target = $region76
        $region75: #{mlp_forward.1} parent=71 // pred_region
          %s1324 = sand.u32 %s272, 1
          %s1325 = scalar_lea.sflag [#allocation4], %s1324
          %s1326 = sand.u32 %s272, 1
          %s1327 = scalar_lea.vmem [#allocation3], %s1326
          %1328 = dma.done %s1325, 16
        $region76: #{mlp_forward.1} parent=71 // pred_fallthru
          _
      $region72: #{mlp_forward.1} parent=5 // pred_fallthru
        _
    $region6: #{mlp_forward.1} parent=1 // loop_footer
      %s26 = sadd.s32 1, %s22
    $region7: #{mlp_forward.1} parent=1 // loop_footer_branch
      %21 = sbr.rel target = $region3
    $region8: #{mlp_forward.1} parent=1 // loop_exit
      _
    %1329 = vsyncpa [#allocation4], 1
    %s1330 = scalar_lea.sflag [#allocation4], 1
    %1331 = vsyncpa %s1330, 1

</llo_original>
